<compile_context>
chip_gen: v7x
topology: tpu7x:2x2x1
jax: 0.10.0
libtpu: 0.0.40
codegen_flags: <defaults>
</compile_context>

<pallas_src>
import jax
import jax.numpy as jnp
from jax.experimental import pallas as pl
from jax.experimental.pallas import tpu as pltpu

IN_F = 6
H1 = 16
H2 = 256
OUT_F = 7
OUT_PAD = 8            # pad fc3 output to 8 cols; block last dim == full array dim
BN_EPS = 1e-5
MAX_TB = 4096          # VMEM-safe batch tile cap (sized for v7x's 32 MiB scoped VMEM)


def _round_up(n, m):
    return ((n + m - 1) // m) * m


def _net_kernel(x_ref, w1_ref, b1_ref, w2_ref, b2_ref, w3_ref, b3_ref, o_ref):
    """One batch tile: (fc1 + folded BN) -> ReLU -> fc2 -> ReLU -> fc3 -> ReLU -> sigmoid."""
    # fc1 (eval-mode BatchNorm already folded into w1/b1), then ReLU.
    h = jnp.dot(x_ref[...], w1_ref[...], preferred_element_type=jnp.float32)
    h = jnp.maximum(h + b1_ref[...], 0.0)
    # TODO(synk): training-mode dropout(p=0.7) / batch-statistic BN not implemented (eval semantics).

    # fc2 + ReLU
    h = jnp.dot(h, w2_ref[...], preferred_element_type=jnp.float32)
    h = jnp.maximum(h + b2_ref[...], 0.0)

    # fc3 (zero-padded to 8 output cols) + ReLU + exact sigmoid.
    y = jnp.dot(h, w3_ref[...], preferred_element_type=jnp.float32)
    y = jnp.maximum(y + b3_ref[...], 0.0)
    y = 1.0 / (1.0 + jnp.exp(-y))          # exp on EUP; exact divide (slots have slack)

    o_ref[...] = y.astype(o_ref.dtype)


def prepare_params(params):
    """One-time prep (hoisted out of the per-call wrapper):
    fold eval-mode BatchNorm1d(16) into fc1 and zero-pad fc3 to OUT_PAD columns."""
    inv_std = params["gamma"] * jax.lax.rsqrt(params["running_var"] + BN_EPS)   # [1, H1]
    w1f = params["w1"] * inv_std                                                # [IN_F, H1]
    b1f = (params["b1"] - params["running_mean"]) * inv_std + params["beta"]    # [1, H1]

    w3p = jnp.zeros((H2, OUT_PAD), jnp.float32).at[:, :OUT_F].set(params["w3"])
    b3p = jnp.zeros((1, OUT_PAD), jnp.float32).at[:, :OUT_F].set(params["b3"])

    return {
        "w1": w1f, "b1": b1f,
        "w2": params["w2"], "b2": params["b2"],
        "w3": w3p, "b3": b3p,
    }


def net_forward(x, prepared, *, block_b=4096):
    """x: [B, 6] float32 -> [B, 7] float32.

    prepared: output of prepare_params() (BN folded, fc3 padded), computed once.
    block_b : requested batch tile (rounded to a multiple of 8, capped at MAX_TB).
              Batches stream tile-by-tile with double-buffered DMA; weights stay
              VMEM-resident via constant index_maps.
    """
    B = x.shape[0]

    # Batch tiling (sublane-aligned), capped for v7x VMEM; keep >= 2 grid steps
    # when possible so the parallel batch axis can shard across both TCs on v7x.
    tb = min(_round_up(block_b, 8), _round_up(B, 8), MAX_TB)
    if B > 8:
        tb = min(tb, _round_up(-(-B // 2), 8))
    bp = _round_up(B, tb)
    if bp != B:
        x = jnp.pad(x, ((0, bp - B), (0, 0)))

    const = lambda i: (0, 0)   # weights/biases: same block every step -> VMEM resident

    out = pl.pallas_call(
        _net_kernel,
        out_shape=jax.ShapeDtypeStruct((bp, OUT_PAD), jnp.float32),
        grid=(bp // tb,),
        in_specs=[
            pl.BlockSpec((tb, IN_F), lambda i: (i, 0)),   # x: streamed per batch tile
            pl.BlockSpec((IN_F, H1), const),
            pl.BlockSpec((1, H1), const),
            pl.BlockSpec((H1, H2), const),
            pl.BlockSpec((1, H2), const),
            pl.BlockSpec((H2, OUT_PAD), const),
            pl.BlockSpec((1, OUT_PAD), const),
        ],
        out_specs=pl.BlockSpec((tb, OUT_PAD), lambda i: (i, 0)),
        compiler_params=pltpu.CompilerParams(
            dimension_semantics=("parallel",),            # v7x: shard batch tiles across 2 TCs
        ),
    )(x, prepared["w1"], prepared["b1"], prepared["w2"], prepared["b2"],
      prepared["w3"], prepared["b3"])

    return out[:B, :OUT_F]


def init_params(key):
    """Deterministic parameter init mimicking PyTorch defaults (uniform fan-in)."""
    ks = jax.random.split(key, 6)

    def linear(kw, kb, fan_in, fan_out):
        bound = 1.0 / jnp.sqrt(fan_in)
        # stored as [in, out] so the kernel computes x @ W
        w = jax.random.uniform(kw, (fan_in, fan_out), jnp.float32, -bound, bound)
        b = jax.random.uniform(kb, (1, fan_out), jnp.float32, -bound, bound)
        return w, b

    w1, b1 = linear(ks[0], ks[1], IN_F, H1)
    w2, b2 = linear(ks[2], ks[3], H1, H2)
    w3, b3 = linear(ks[4], ks[5], H2, OUT_F)

    return {
        "w1": w1, "b1": b1,
        "w2": w2, "b2": b2,
        "w3": w3, "b3": b3,
        # BatchNorm1d(16) affine params + running stats (fresh-module defaults)
        "gamma": jnp.ones((1, H1), jnp.float32),
        "beta": jnp.zeros((1, H1), jnp.float32),
        "running_mean": jnp.zeros((1, H1), jnp.float32),
        "running_var": jnp.ones((1, H1), jnp.float32),
    }


def _reference_forward(x, p):
    """Pure-JAX reference (eval-mode semantics)."""
    h = x @ p["w1"] + p["b1"]
    h = (h - p["running_mean"]) * jax.lax.rsqrt(p["running_var"] + BN_EPS) * p["gamma"] + p["beta"]
    h = jnp.maximum(h, 0.0)
    h = jnp.maximum(h @ p["w2"] + p["b2"], 0.0)
    y = jnp.maximum(h @ p["w3"] + p["b3"], 0.0)
    return jax.nn.sigmoid(y)


if __name__ == "__main__":
    key = jax.random.PRNGKey(0)
    k_param, k_x = jax.random.split(key)

    B = 20  # deliberately not a tile multiple: exercises batch padding
    params = init_params(k_param)
    prepared = prepare_params(params)   # BN fold + fc3 pad done once, outside the hot path
    x = jax.random.normal(k_x, (B, IN_F), jnp.float32)

    ref = _reference_forward(x, params)

    # Small tile -> 3 batch tiles, exercises the grid + padding path.
    out = jax.block_until_ready(net_forward(x, prepared, block_b=8))
    assert out.shape == (B, OUT_F)
    # tolerance covers MXU f32 matmul rounding only (sigmoid is exact now)
    assert jnp.allclose(out, ref, atol=5e-3, rtol=5e-3), "small-tile mismatch vs reference"

    # Default (large-tile) path: tb auto-clamped to keep >= 2 grid steps.
    out_default = jax.block_until_ready(net_forward(x, prepared))
    assert out_default.shape == (B, OUT_F)
    assert jnp.allclose(out_default, ref, atol=5e-3, rtol=5e-3), "default-tile mismatch vs reference"

    print("KERNEL_OK")
</pallas_src>

<mosaic_0001>
module attributes {stable_mosaic.version = 11 : i64} {
  func.func @_net_kernel(%arg0: i32, %arg1: memref<8x6xf32, #tpu.memory_space<vmem>>, %arg2: memref<6x16xf32, #tpu.memory_space<vmem>>, %arg3: memref<1x16xf32, #tpu.memory_space<vmem>>, %arg4: memref<16x256xf32, #tpu.memory_space<vmem>>, %arg5: memref<1x256xf32, #tpu.memory_space<vmem>>, %arg6: memref<256x8xf32, #tpu.memory_space<vmem>>, %arg7: memref<1x8xf32, #tpu.memory_space<vmem>>, %arg8: memref<8x8xf32, #tpu.memory_space<vmem>>) attributes {dimension_semantics = [#tpu.dimension_semantics<parallel>], iteration_bounds = array<i64: 3>, scalar_prefetch = 0 : i64, scratch_operands = 0 : i64, tpu.core_type = #tpu.core_type<tc>, window_params = [{transform_indices = @transform_0, window_bounds = array<i64: 8, 6>}, {pipeline_mode = #tpu.pipeline_mode<synchronous>, transform_indices = @transform_1, window_bounds = array<i64: 6, 16>}, {pipeline_mode = #tpu.pipeline_mode<synchronous>, transform_indices = @transform_2, window_bounds = array<i64: 1, 16>}, {pipeline_mode = #tpu.pipeline_mode<synchronous>, transform_indices = @transform_3, window_bounds = array<i64: 16, 256>}, {pipeline_mode = #tpu.pipeline_mode<synchronous>, transform_indices = @transform_4, window_bounds = array<i64: 1, 256>}, {pipeline_mode = #tpu.pipeline_mode<synchronous>, transform_indices = @transform_5, window_bounds = array<i64: 256, 8>}, {pipeline_mode = #tpu.pipeline_mode<synchronous>, transform_indices = @transform_6, window_bounds = array<i64: 1, 8>}, {transform_indices = @transform_7, window_bounds = array<i64: 8, 8>}]} {
    %c0 = arith.constant 0 : index
    %c0_0 = arith.constant 0 : index
    %0 = vector.load %arg1[%c0, %c0_0] : memref<8x6xf32, #tpu.memory_space<vmem>>, vector<8x6xf32>
    %c0_1 = arith.constant 0 : index
    %c0_2 = arith.constant 0 : index
    %1 = vector.load %arg2[%c0_1, %c0_2] : memref<6x16xf32, #tpu.memory_space<vmem>>, vector<6x16xf32>
    %cst = arith.constant dense<0.000000e+00> : vector<8x16xf32>
    %2 = tpu.matmul %0, %1, %cst {dimension_numbers = #tpu.dot_dimension_numbers<[1], [0], [0], [1], [0, 0, 1, 1], [], []>} : vector<8x6xf32>, vector<6x16xf32>, vector<8x16xf32> -> vector<8x16xf32>
    %c0_3 = arith.constant 0 : index
    %c0_4 = arith.constant 0 : index
    %3 = vector.load %arg3[%c0_3, %c0_4] : memref<1x16xf32, #tpu.memory_space<vmem>>, vector<1x16xf32>
    %4 = vector.broadcast %3 : vector<1x16xf32> to vector<8x16xf32>
    %5 = arith.addf %2, %4 : vector<8x16xf32>
    %cst_5 = arith.constant 0.000000e+00 : f32
    %6 = vector.broadcast %cst_5 : f32 to vector<8x16xf32>
    %7 = arith.maximumf %5, %6 : vector<8x16xf32>
    %c0_6 = arith.constant 0 : index
    %c0_7 = arith.constant 0 : index
    %8 = vector.load %arg4[%c0_6, %c0_7] : memref<16x256xf32, #tpu.memory_space<vmem>>, vector<16x256xf32>
    %cst_8 = arith.constant dense<0.000000e+00> : vector<8x256xf32>
    %9 = tpu.matmul %7, %8, %cst_8 {dimension_numbers = #tpu.dot_dimension_numbers<[1], [0], [0], [1], [0, 0, 1, 1], [], []>} : vector<8x16xf32>, vector<16x256xf32>, vector<8x256xf32> -> vector<8x256xf32>
    %c0_9 = arith.constant 0 : index
    %c0_10 = arith.constant 0 : index
    %10 = vector.load %arg5[%c0_9, %c0_10] : memref<1x256xf32, #tpu.memory_space<vmem>>, vector<1x256xf32>
    %11 = vector.broadcast %10 : vector<1x256xf32> to vector<8x256xf32>
    %12 = arith.addf %9, %11 : vector<8x256xf32>
    %cst_11 = arith.constant 0.000000e+00 : f32
    %13 = vector.broadcast %cst_11 : f32 to vector<8x256xf32>
    %14 = arith.maximumf %12, %13 : vector<8x256xf32>
    %c0_12 = arith.constant 0 : index
    %c0_13 = arith.constant 0 : index
    %15 = vector.load %arg6[%c0_12, %c0_13] : memref<256x8xf32, #tpu.memory_space<vmem>>, vector<256x8xf32>
    %cst_14 = arith.constant dense<0.000000e+00> : vector<8x8xf32>
    %16 = tpu.matmul %14, %15, %cst_14 {dimension_numbers = #tpu.dot_dimension_numbers<[1], [0], [0], [1], [0, 0, 1, 1], [], []>} : vector<8x256xf32>, vector<256x8xf32>, vector<8x8xf32> -> vector<8x8xf32>
    %c0_15 = arith.constant 0 : index
    %c0_16 = arith.constant 0 : index
    %17 = vector.load %arg7[%c0_15, %c0_16] : memref<1x8xf32, #tpu.memory_space<vmem>>, vector<1x8xf32>
    %18 = vector.broadcast %17 : vector<1x8xf32> to vector<8x8xf32>
    %19 = arith.addf %16, %18 : vector<8x8xf32>
    %cst_17 = arith.constant 0.000000e+00 : f32
    %20 = vector.broadcast %cst_17 : f32 to vector<8x8xf32>
    %21 = arith.maximumf %19, %20 : vector<8x8xf32>
    %cst_18 = arith.constant 0.000000e+00 : f32
    %22 = vector.broadcast %cst_18 : f32 to vector<8x8xf32>
    %23 = arith.subf %22, %21 : vector<8x8xf32>
    %24 = math.exp %23 : vector<8x8xf32>
    %cst_19 = arith.constant 1.000000e+00 : f32
    %25 = vector.broadcast %cst_19 : f32 to vector<8x8xf32>
    %26 = arith.addf %25, %24 : vector<8x8xf32>
    %cst_20 = arith.constant 1.000000e+00 : f32
    %27 = vector.broadcast %cst_20 : f32 to vector<8x8xf32>
    %28 = arith.divf %27, %26 : vector<8x8xf32>
    %c0_21 = arith.constant 0 : index
    %c0_22 = arith.constant 0 : index
    %29 = vector.load %arg8[%c0_21, %c0_22] : memref<8x8xf32, #tpu.memory_space<vmem>>, vector<8x8xf32>
    tpu.vector_store %arg8[%c0_21, %c0_22], %28 {strides = array<i32>} : memref<8x8xf32, #tpu.memory_space<vmem>>, vector<8x8xf32>,
    return
  }
  func.func @transform_0(%arg0: i32) -> (i32, i32) {
    %c0_i32 = arith.constant 0 : i32
    %c0_i32_0 = arith.constant 0 : i32
    return %arg0, %c0_i32 : i32, i32
  }
  func.func @transform_1(%arg0: i32) -> (i32, i32) {
    %c0_i32 = arith.constant 0 : i32
    %c0_i32_0 = arith.constant 0 : i32
    %c0_i32_1 = arith.constant 0 : i32
    return %c0_i32, %c0_i32_0 : i32, i32
  }
  func.func @transform_2(%arg0: i32) -> (i32, i32) {
    %c0_i32 = arith.constant 0 : i32
    %c0_i32_0 = arith.constant 0 : i32
    %c0_i32_1 = arith.constant 0 : i32
    return %c0_i32, %c0_i32_0 : i32, i32
  }
  func.func @transform_3(%arg0: i32) -> (i32, i32) {
    %c0_i32 = arith.constant 0 : i32
    %c0_i32_0 = arith.constant 0 : i32
    %c0_i32_1 = arith.constant 0 : i32
    return %c0_i32, %c0_i32_0 : i32, i32
  }
  func.func @transform_4(%arg0: i32) -> (i32, i32) {
    %c0_i32 = arith.constant 0 : i32
    %c0_i32_0 = arith.constant 0 : i32
    %c0_i32_1 = arith.constant 0 : i32
    return %c0_i32, %c0_i32_0 : i32, i32
  }
  func.func @transform_5(%arg0: i32) -> (i32, i32) {
    %c0_i32 = arith.constant 0 : i32
    %c0_i32_0 = arith.constant 0 : i32
    %c0_i32_1 = arith.constant 0 : i32
    return %c0_i32, %c0_i32_0 : i32, i32
  }
  func.func @transform_6(%arg0: i32) -> (i32, i32) {
    %c0_i32 = arith.constant 0 : i32
    %c0_i32_0 = arith.constant 0 : i32
    %c0_i32_1 = arith.constant 0 : i32
    return %c0_i32, %c0_i32_0 : i32, i32
  }
  func.func @transform_7(%arg0: i32) -> (i32, i32) {
    %c0_i32 = arith.constant 0 : i32
    %c0_i32_0 = arith.constant 0 : i32
    return %arg0, %c0_i32 : i32, i32
  }
}

</mosaic_0001>

<llo_original>
// kernel: tpu_custom_call.1
$region0: #{tpu_custom_call.1}
  #allocation0 [shape = 'u32[]', space=smem, size = 0x4, offset = 0x4, fixed_abs, tag = 'smem constant byte address 0x4 - core index']
  #allocation1 [shape = 'u32[144,128]{1,0:T(1,128)}', space=vmem, size = 0x12000, scoped, tag = 'internal scratch']
  %s0 = inlined_call_operand.vmem [shape: f32[24,6], index: 0, kind: input, shape index: {}]
  %s1 = inlined_call_operand.vmem [shape: f32[6,16], index: 1, kind: input, shape index: {}]
  %s2 = inlined_call_operand.vmem [shape: f32[1,16], index: 2, kind: input, shape index: {}]
  %s3 = inlined_call_operand.vmem [shape: f32[16,256], index: 3, kind: input, shape index: {}]
  %s4 = inlined_call_operand.vmem [shape: f32[1,256], index: 4, kind: input, shape index: {}]
  %s5 = inlined_call_operand.vmem [shape: f32[256,8], index: 5, kind: input, shape index: {}]
  %s6 = inlined_call_operand.vmem [shape: f32[1,8], index: 6, kind: input, shape index: {}]
  %s7 = inlined_call_operand.vmem [shape: f32[24,8], index: 7, kind: output, shape index: {}]
  %s8 = sld [smem:[#allocation0]]
  $region61: #{tpu_custom_call.1} parent=0
    _
  %s10 = ssub.s32 1, %s8
  %s11 = scalar_select 0, %s10, %s8
  loop: start=0, step=1, limit=5
  $region2: #{tpu_custom_call.1} parent=0 // loop_pre_header
    _
  $region3: #{tpu_custom_call.1} parent=0 // loop_header
    %s13 = sphi 0, %s17
    %p14 = scmp.ge.s32.totalorder %s13, 5
    %s23 = sphi 0, %s25
    %s26 = sphi 0, %s23
    %s27 = sphi 0, %s26
    %s43 = sphi 0, %s27
    %s47 = sphi 0, %s47
    %s49 = sphi 0, %s47
    %s50 = sphi 0, %s49
    %s64 = sphi 0, %s50
    %s68 = sphi 0, %s68
    %s70 = sphi 0, %s68
    %s71 = sphi 0, %s70
    %s85 = sphi 0, %s71
    %s89 = sphi 0, %s89
    %s91 = sphi 0, %s89
    %s92 = sphi 0, %s91
    %s106 = sphi 0, %s92
    %s110 = sphi 0, %s110
    %s112 = sphi 0, %s110
    %s113 = sphi 0, %s112
    %s127 = sphi 0, %s113
    %s131 = sphi 0, %s131
    %s133 = sphi 0, %s131
    %s134 = sphi 0, %s133
    %s148 = sphi 0, %s134
    %s152 = sphi 0, %s152
    %s154 = sphi 0, %s152
    %s155 = sphi 0, %s154
    %s169 = sphi 0, %s155
    %s175 = sphi 0, %s177
    %s178 = sphi 0, %s175
    %s179 = sphi 0, %s178
    %s195 = sphi 0, %s179
  $region4: #{tpu_custom_call.1} parent=0 // loop_header_branch
    %16 = sbr.rel (%p14) target = $region8
  $region5: #{tpu_custom_call.1} parent=0 // loop_body
    %s18 = ssub.s32 %s13, 1
    %s19 = ssub.s32 %s13, 2
    %s20 = sadd.s32 %s13, 1
    %s21 = ssub.s32 %s13, %s20
    %p22 = scmp.eq.s32.totalorder %s21, 0
    %s24 = sadd.s32 %s23, 1
    %s25 = scalar_select %p22, %s23, %s24
    %p28 = pneg %p22
    %p29 = scmp.eq.s32.totalorder %s13, 2
    %p30 = por %p28, %p29
    %p31 = scmp.ne.s32.totalorder %s23, %s26
    %p32 = scmp.eq.s32.totalorder %s13, 0
    %p33 = por %p31, %p32
    %p34 = scmp.ne.s32.totalorder %s23, %s26
    %p35 = scmp.eq.s32.totalorder %s18, 2
    %p36 = por %p34, %p35
    %p37 = scmp.ne.s32.totalorder %s26, %s27
    %p38 = scmp.eq.s32.totalorder %s18, 0
    %p39 = por %p37, %p38
    %p40 = scmp.ne.s32.totalorder %s26, %s27
    %p41 = scmp.eq.s32.totalorder %s19, 2
    %p42 = por %p40, %p41
    %p44 = scmp.ne.s32.totalorder %s27, %s43
    %p45 = scmp.eq.s32.totalorder %s19, 0
    %p46 = por %p44, %p45
    %s48 = sadd.s32 %s47, 1
    %p51 = scmp.eq.s32.totalorder %s13, 2
    %p52 = scmp.ne.s32.totalorder %s47, %s49
    %p53 = scmp.eq.s32.totalorder %s13, 0
    %p54 = por %p52, %p53
    %p55 = scmp.ne.s32.totalorder %s47, %s49
    %p56 = scmp.eq.s32.totalorder %s18, 2
    %p57 = por %p55, %p56
    %p58 = scmp.ne.s32.totalorder %s49, %s50
    %p59 = scmp.eq.s32.totalorder %s18, 0
    %p60 = por %p58, %p59
    %p61 = scmp.ne.s32.totalorder %s49, %s50
    %p62 = scmp.eq.s32.totalorder %s19, 2
    %p63 = por %p61, %p62
    %p65 = scmp.ne.s32.totalorder %s50, %s64
    %p66 = scmp.eq.s32.totalorder %s19, 0
    %p67 = por %p65, %p66
    %s69 = sadd.s32 %s68, 1
    %p72 = scmp.eq.s32.totalorder %s13, 2
    %p73 = scmp.ne.s32.totalorder %s68, %s70
    %p74 = scmp.eq.s32.totalorder %s13, 0
    %p75 = por %p73, %p74
    %p76 = scmp.ne.s32.totalorder %s68, %s70
    %p77 = scmp.eq.s32.totalorder %s18, 2
    %p78 = por %p76, %p77
    %p79 = scmp.ne.s32.totalorder %s70, %s71
    %p80 = scmp.eq.s32.totalorder %s18, 0
    %p81 = por %p79, %p80
    %p82 = scmp.ne.s32.totalorder %s70, %s71
    %p83 = scmp.eq.s32.totalorder %s19, 2
    %p84 = por %p82, %p83
    %p86 = scmp.ne.s32.totalorder %s71, %s85
    %p87 = scmp.eq.s32.totalorder %s19, 0
    %p88 = por %p86, %p87
    %s90 = sadd.s32 %s89, 1
    %p93 = scmp.eq.s32.totalorder %s13, 2
    %p94 = scmp.ne.s32.totalorder %s89, %s91
    %p95 = scmp.eq.s32.totalorder %s13, 0
    %p96 = por %p94, %p95
    %p97 = scmp.ne.s32.totalorder %s89, %s91
    %p98 = scmp.eq.s32.totalorder %s18, 2
    %p99 = por %p97, %p98
    %p100 = scmp.ne.s32.totalorder %s91, %s92
    %p101 = scmp.eq.s32.totalorder %s18, 0
    %p102 = por %p100, %p101
    %p103 = scmp.ne.s32.totalorder %s91, %s92
    %p104 = scmp.eq.s32.totalorder %s19, 2
    %p105 = por %p103, %p104
    %p107 = scmp.ne.s32.totalorder %s92, %s106
    %p108 = scmp.eq.s32.totalorder %s19, 0
    %p109 = por %p107, %p108
    %s111 = sadd.s32 %s110, 1
    %p114 = scmp.eq.s32.totalorder %s13, 2
    %p115 = scmp.ne.s32.totalorder %s110, %s112
    %p116 = scmp.eq.s32.totalorder %s13, 0
    %p117 = por %p115, %p116
    %p118 = scmp.ne.s32.totalorder %s110, %s112
    %p119 = scmp.eq.s32.totalorder %s18, 2
    %p120 = por %p118, %p119
    %p121 = scmp.ne.s32.totalorder %s112, %s113
    %p122 = scmp.eq.s32.totalorder %s18, 0
    %p123 = por %p121, %p122
    %p124 = scmp.ne.s32.totalorder %s112, %s113
    %p125 = scmp.eq.s32.totalorder %s19, 2
    %p126 = por %p124, %p125
    %p128 = scmp.ne.s32.totalorder %s113, %s127
    %p129 = scmp.eq.s32.totalorder %s19, 0
    %p130 = por %p128, %p129
    %s132 = sadd.s32 %s131, 1
    %p135 = scmp.eq.s32.totalorder %s13, 2
    %p136 = scmp.ne.s32.totalorder %s131, %s133
    %p137 = scmp.eq.s32.totalorder %s13, 0
    %p138 = por %p136, %p137
    %p139 = scmp.ne.s32.totalorder %s131, %s133
    %p140 = scmp.eq.s32.totalorder %s18, 2
    %p141 = por %p139, %p140
    %p142 = scmp.ne.s32.totalorder %s133, %s134
    %p143 = scmp.eq.s32.totalorder %s18, 0
    %p144 = por %p142, %p143
    %p145 = scmp.ne.s32.totalorder %s133, %s134
    %p146 = scmp.eq.s32.totalorder %s19, 2
    %p147 = por %p145, %p146
    %p149 = scmp.ne.s32.totalorder %s134, %s148
    %p150 = scmp.eq.s32.totalorder %s19, 0
    %p151 = por %p149, %p150
    %s153 = sadd.s32 %s152, 1
    %p156 = scmp.eq.s32.totalorder %s13, 2
    %p157 = scmp.ne.s32.totalorder %s152, %s154
    %p158 = scmp.eq.s32.totalorder %s13, 0
    %p159 = por %p157, %p158
    %p160 = scmp.ne.s32.totalorder %s152, %s154
    %p161 = scmp.eq.s32.totalorder %s18, 2
    %p162 = por %p160, %p161
    %p163 = scmp.ne.s32.totalorder %s154, %s155
    %p164 = scmp.eq.s32.totalorder %s18, 0
    %p165 = por %p163, %p164
    %p166 = scmp.ne.s32.totalorder %s154, %s155
    %p167 = scmp.eq.s32.totalorder %s19, 2
    %p168 = por %p166, %p167
    %p170 = scmp.ne.s32.totalorder %s155, %s169
    %p171 = scmp.eq.s32.totalorder %s19, 0
    %p172 = por %p170, %p171
    %s173 = ssub.s32 %s13, %s20
    %p174 = scmp.eq.s32.totalorder %s173, 0
    %s176 = sadd.s32 %s175, 1
    %s177 = scalar_select %p174, %s175, %s176
    %p180 = pneg %p174
    %p181 = scmp.eq.s32.totalorder %s13, 2
    %p182 = por %p180, %p181
    %p183 = scmp.ne.s32.totalorder %s175, %s178
    %p184 = scmp.eq.s32.totalorder %s13, 0
    %p185 = por %p183, %p184
    %p186 = scmp.ne.s32.totalorder %s175, %s178
    %p187 = scmp.eq.s32.totalorder %s18, 2
    %p188 = por %p186, %p187
    %p189 = scmp.ne.s32.totalorder %s178, %s179
    %p190 = scmp.eq.s32.totalorder %s18, 0
    %p191 = por %p189, %p190
    %p192 = scmp.ne.s32.totalorder %s178, %s179
    %p193 = scmp.eq.s32.totalorder %s19, 2
    %p194 = por %p192, %p193
    %p196 = scmp.ne.s32.totalorder %s179, %s195
    %p197 = scmp.eq.s32.totalorder %s19, 0
    %p198 = por %p196, %p197
    %p199 = scmp.le.s32.totalorder 1, %s13
    %p200 = scmp.lt.s32.totalorder %s13, 4
    %p201 = pnand %p199, %p200
    %p202 = pneg %p201
    // Predicated region
    $region9: #{tpu_custom_call.1} parent=5 // pred_check
      _
    $region10: #{tpu_custom_call.1} parent=5 // pred_check_branch
      %204 = sbr.rel (%p201) target = $region12
    $region11: #{tpu_custom_call.1} parent=5 // pred_region
      %s205 = ssub.s32 %s13, 1
      // Predicated region
      $region13: #{tpu_custom_call.1} parent=11 // pred_check
        %p206 = pneg %p60
      $region14: #{tpu_custom_call.1} parent=11 // pred_check_branch
        %208 = sbr.rel (%p206) target = $region16
      $region15: #{tpu_custom_call.1} parent=11 // pred_region
        _
      $region16: #{tpu_custom_call.1} parent=11 // pred_fallthru
        _
      // Predicated region
      $region17: #{tpu_custom_call.1} parent=11 // pred_check
        %p209 = pneg %p81
      $region18: #{tpu_custom_call.1} parent=11 // pred_check_branch
        %211 = sbr.rel (%p209) target = $region20
      $region19: #{tpu_custom_call.1} parent=11 // pred_region
        _
      $region20: #{tpu_custom_call.1} parent=11 // pred_fallthru
        _
      // Predicated region
      $region21: #{tpu_custom_call.1} parent=11 // pred_check
        %p212 = pneg %p102
      $region22: #{tpu_custom_call.1} parent=11 // pred_check_branch
        %214 = sbr.rel (%p212) target = $region24
      $region23: #{tpu_custom_call.1} parent=11 // pred_region
        _
      $region24: #{tpu_custom_call.1} parent=11 // pred_fallthru
        _
      // Predicated region
      $region25: #{tpu_custom_call.1} parent=11 // pred_check
        %p215 = pneg %p123
      $region26: #{tpu_custom_call.1} parent=11 // pred_check_branch
        %217 = sbr.rel (%p215) target = $region28
      $region27: #{tpu_custom_call.1} parent=11 // pred_region
        _
      $region28: #{tpu_custom_call.1} parent=11 // pred_fallthru
        _
      // Predicated region
      $region29: #{tpu_custom_call.1} parent=11 // pred_check
        %p218 = pneg %p144
      $region30: #{tpu_custom_call.1} parent=11 // pred_check_branch
        %220 = sbr.rel (%p218) target = $region32
      $region31: #{tpu_custom_call.1} parent=11 // pred_region
        _
      $region32: #{tpu_custom_call.1} parent=11 // pred_fallthru
        _
      // Predicated region
      $region33: #{tpu_custom_call.1} parent=11 // pred_check
        %p221 = pneg %p165
      $region34: #{tpu_custom_call.1} parent=11 // pred_check_branch
        %223 = sbr.rel (%p221) target = $region36
      $region35: #{tpu_custom_call.1} parent=11 // pred_region
        _
      $region36: #{tpu_custom_call.1} parent=11 // pred_fallthru
        _
    $region12: #{tpu_custom_call.1} parent=5 // pred_fallthru
      _
    %p224 = scmp.lt.s32.totalorder %s13, 3
    // Predicated region
    $region37: #{tpu_custom_call.1} parent=5 // pred_check
      %p225 = pneg %p224
    $region38: #{tpu_custom_call.1} parent=5 // pred_check_branch
      %227 = sbr.rel (%p225) target = $region40
    $region39: #{tpu_custom_call.1} parent=5 // pred_region
      // Predicated region
      $region41: #{tpu_custom_call.1} parent=39 // pred_check
        %p228 = pneg %p33
      $region42: #{tpu_custom_call.1} parent=39 // pred_check_branch
        %230 = sbr.rel (%p228) target = $region44
      $region43: #{tpu_custom_call.1} parent=39 // pred_region
        %p231 = scmp.lt.s32.totalorder %s13, 2
        %s232 = scalar_select %p231, %s13, 2
        %s233 = smul.addr %s232, 8
        %s234 = scalar_lea.vmem %s0, %s233
      $region44: #{tpu_custom_call.1} parent=39 // pred_fallthru
        _
    $region40: #{tpu_custom_call.1} parent=5 // pred_fallthru
      _
    %p235 = scmp.le.s32.totalorder 1, %s13
    %p236 = scmp.lt.s32.totalorder %s13, 4
    %p237 = pnand %p235, %p236
    %p238 = pneg %p237
    // Predicated region
    $region45: #{tpu_custom_call.1} parent=5 // pred_check
      _
    $region46: #{tpu_custom_call.1} parent=5 // pred_check_branch
      %240 = sbr.rel (%p237) target = $region48
    $region47: #{tpu_custom_call.1} parent=5 // pred_region
      %s241 = ssub.s32 %s13, 1
      %p242 = scmp.lt.s32.totalorder %s18, 2
      %s243 = scalar_select %p242, %s18, 2
      %s244 = smul.addr %s243, 8
      %s245 = scalar_lea.vmem %s0, %s244
      %p246 = pneg %p39
      %p247 = pneg %p36
      %p248 = pneg %p60
      %p249 = pneg %p57
      %p250 = pneg %p81
      %p251 = pneg %p78
      %p252 = pneg %p102
      %p253 = pneg %p99
      %p254 = pneg %p123
      %p255 = pneg %p120
      %p256 = pneg %p144
      %p257 = pneg %p141
      %p258 = pneg %p165
      %p259 = pneg %p162
      %p260 = pneg %p191
      %p261 = pneg %p188
      %p262 = scmp.lt.s32.totalorder %s18, 2
      %s263 = scalar_select %p262, %s18, 2
      %s264 = smul.addr %s263, 8
      %s265 = scalar_lea.vmem %s7, %s264
      %p266 = scmp.lt.s32.totalorder %s18, 2
      %s267 = scalar_select %p266, %s18, 2
      %s268 = smul.addr %s267, 8
      %s269 = scalar_lea.vmem %s0, %s268
      %p270 = scmp.lt.s32.totalorder %s18, 2
      %s271 = scalar_select %p270, %s18, 2
      %s272 = smul.addr %s271, 8
      %s273 = scalar_lea.vmem %s7, %s272
      %v274 = vld [vmem:[%s269] sm:$0xff]
      %v275 = vld [vmem:[%s1] sm:$0x3f]
      %v276 = vld [vmem:[%s2] sm:$0x1]
      %v278 = vlaneseq
      %v279 = vshrl.u32 %v278, 7
      %v280 = vsub.s32 0, %v279
      %v281 = vrot.slane %v276, %v280
      %vm283 = vcmask 48128
      %v285 = vsel %vm283, %v274, 0
      %vm287 = vcmask 1045504
      %v289 = vsel %vm287, %v275, 0
      %291 = vmatprep.subr.mxu0 0.0
      %292 = vmatpush1.msra.mxu0 %v289
      %293 = vmatprep.subr.mxu0 0.0
      %294 = vmatpush1.msra.mxu0 0.0
      %295 = vmatprep.subr.mxu0 0.0
      %296 = vmatpush1.msra.mxu0 0.0
      %297 = vmatprep.subr.mxu0 0.0
      %298 = vmatpush1.msra.mxu0 0.0
      %299 = vmatprep.subr.mxu0 0.0
      %300 = vmatpush1.msra.mxu0 0.0
      %301 = vmatprep.subr.mxu0 0.0
      %302 = vmatpush1.msra.mxu0 0.0
      %303 = vmatprep.subr.mxu0 0.0
      %304 = vmatpush1.msra.mxu0 0.0
      %305 = vmatprep.subr.mxu0 0.0
      %306 = vmatpush1.msra.mxu0 0.0
      %307 = vmatprep.subr.mxu0 0.0
      %308 = vmatpush1.msra.mxu0 0.0
      %309 = vmatprep.subr.mxu0 0.0
      %310 = vmatpush1.msra.mxu0 0.0
      %311 = vmatprep.subr.mxu0 0.0
      %312 = vmatpush1.msra.mxu0 0.0
      %313 = vmatprep.subr.mxu0 0.0
      %314 = vmatpush1.msra.mxu0 0.0
      %315 = vmatprep.subr.mxu0 0.0
      %316 = vmatpush1.msra.mxu0 0.0
      %317 = vmatprep.subr.mxu0 0.0
      %318 = vmatpush1.msra.mxu0 0.0
      %319 = vmatprep.subr.mxu0 0.0
      %320 = vmatpush1.msra.mxu0 0.0
      %321 = vmatprep.subr.mxu0 0.0
      %322 = vmatpush1.msra.mxu0 0.0
      %323 = vmatprep.subr.mxu0 0.0
      %324 = vmatpush1.msra.mxu0 0.0
      %325 = vmatprep.subr.mxu0 0.0
      %326 = vmatpush1.msra.mxu0 0.0
      %327 = vmatprep.subr.mxu0 0.0
      %328 = vmatpush1.msra.mxu0 0.0
      %329 = vmatprep.subr.mxu0 0.0
      %330 = vmatpush1.msra.mxu0 0.0
      %331 = vmatprep.subr.mxu0 0.0
      %332 = vmatpush1.msra.mxu0 0.0
      %333 = vmatprep.subr.mxu0 0.0
      %334 = vmatpush1.msra.mxu0 0.0
      %335 = vmatprep.subr.mxu0 0.0
      %336 = vmatpush1.msra.mxu0 0.0
      %337 = vmatprep.subr.mxu0 0.0
      %338 = vmatpush1.msra.mxu0 0.0
      %339 = vmatprep.subr.mxu0 0.0
      %340 = vmatpush1.msra.mxu0 0.0
      %341 = vmatprep.subr.mxu0 0.0
      %342 = vmatpush1.msra.mxu0 0.0
      %343 = vmatprep.subr.mxu0 0.0
      %344 = vmatpush1.msra.mxu0 0.0
      %345 = vmatprep.subr.mxu0 0.0
      %346 = vmatpush1.msra.mxu0 0.0
      %347 = vmatprep.subr.mxu0 0.0
      %348 = vmatpush1.msra.mxu0 0.0
      %349 = vmatprep.subr.mxu0 0.0
      %350 = vmatpush1.msra.mxu0 0.0
      %351 = vmatprep.subr.mxu0 0.0
      %352 = vmatpush1.msra.mxu0 0.0
      %353 = vmatprep.subr.mxu0 0.0
      %354 = vmatpush1.msra.mxu0 0.0
      %355 = vmatprep.mubr.f32.mxu0 0.0
      %356 = vmatmul.mubr.f32.gmra.mrb[0].mxu0 %v285
      %v357 = vpop.f32.mrb[0].mxu0
      %v358 = vadd.f32 %v281, %v357
      %v359 = vpop.f32.mrb[0].mxu0
      %360 = vdwg.mxu0
      %v361 = vmax.f32 %v358, 0.0
      %v362 = vld [vmem:[%s3] sm:$0xff]
      %v363 = vld [vmem:[%s3 + $0x8] sm:$0xff]
      %v364 = vld [vmem:[%s3 + $0x10] sm:$0xff]
      %v365 = vld [vmem:[%s3 + $0x18] sm:$0xff]
      %v366 = vld [vmem:[%s4] sm:$0x3]
      %v368 = vlaneseq
      %v369 = vshrl.u32 %v368, 7
      %v370 = vsub.s32 0, %v369
      %v371 = vrot.slane %v366, %v370
      %v372 = vlaneseq
      %v373 = vshrl.u32 %v372, 7
      %v374 = vsub.s32 1, %v373
      %v375 = vrot.slane %v366, %v374
      %vm378 = vcmask 130048
      %v380 = vsel %vm378, %v361, 0
      %382 = vmatprep.subr.mxu0 %v363
      %383 = vmatpush1.msra.mxu0 %v362
      %384 = vmatprep.subr.mxu0 %v365
      %385 = vmatpush1.msra.mxu0 %v364
      %386 = vmatprep.subr.mxu0 0.0
      %387 = vmatpush1.msra.mxu0 0.0
      %388 = vmatprep.subr.mxu0 0.0
      %389 = vmatpush1.msra.mxu0 0.0
      %390 = vmatprep.subr.mxu0 0.0
      %391 = vmatpush1.msra.mxu0 0.0
      %392 = vmatprep.subr.mxu0 0.0
      %393 = vmatpush1.msra.mxu0 0.0
      %394 = vmatprep.subr.mxu0 0.0
      %395 = vmatpush1.msra.mxu0 0.0
      %396 = vmatprep.subr.mxu0 0.0
      %397 = vmatpush1.msra.mxu0 0.0
      %398 = vmatprep.subr.mxu0 0.0
      %399 = vmatpush1.msra.mxu0 0.0
      %400 = vmatprep.subr.mxu0 0.0
      %401 = vmatpush1.msra.mxu0 0.0
      %402 = vmatprep.subr.mxu0 0.0
      %403 = vmatpush1.msra.mxu0 0.0
      %404 = vmatprep.subr.mxu0 0.0
      %405 = vmatpush1.msra.mxu0 0.0
      %406 = vmatprep.subr.mxu0 0.0
      %407 = vmatpush1.msra.mxu0 0.0
      %408 = vmatprep.subr.mxu0 0.0
      %409 = vmatpush1.msra.mxu0 0.0
      %410 = vmatprep.subr.mxu0 0.0
      %411 = vmatpush1.msra.mxu0 0.0
      %412 = vmatprep.subr.mxu0 0.0
      %413 = vmatpush1.msra.mxu0 0.0
      %414 = vmatprep.subr.mxu0 0.0
      %415 = vmatpush1.msra.mxu0 0.0
      %416 = vmatprep.subr.mxu0 0.0
      %417 = vmatpush1.msra.mxu0 0.0
      %418 = vmatprep.subr.mxu0 0.0
      %419 = vmatpush1.msra.mxu0 0.0
      %420 = vmatprep.subr.mxu0 0.0
      %421 = vmatpush1.msra.mxu0 0.0
      %422 = vmatprep.subr.mxu0 0.0
      %423 = vmatpush1.msra.mxu0 0.0
      %424 = vmatprep.subr.mxu0 0.0
      %425 = vmatpush1.msra.mxu0 0.0
      %426 = vmatprep.subr.mxu0 0.0
      %427 = vmatpush1.msra.mxu0 0.0
      %428 = vmatprep.subr.mxu0 0.0
      %429 = vmatpush1.msra.mxu0 0.0
      %430 = vmatprep.subr.mxu0 0.0
      %431 = vmatpush1.msra.mxu0 0.0
      %432 = vmatprep.subr.mxu0 0.0
      %433 = vmatpush1.msra.mxu0 0.0
      %434 = vmatprep.subr.mxu0 0.0
      %435 = vmatpush1.msra.mxu0 0.0
      %436 = vmatprep.subr.mxu0 0.0
      %437 = vmatpush1.msra.mxu0 0.0
      %438 = vmatprep.subr.mxu0 0.0
      %439 = vmatpush1.msra.mxu0 0.0
      %440 = vmatprep.subr.mxu0 0.0
      %441 = vmatpush1.msra.mxu0 0.0
      %442 = vmatprep.subr.mxu0 0.0
      %443 = vmatpush1.msra.mxu0 0.0
      %444 = vmatprep.subr.mxu0 0.0
      %445 = vmatpush1.msra.mxu0 0.0
      %446 = vmatprep.mubr.f32.mxu0 0.0
      %447 = vmatmul.mubr.f32.gmra.mrb[0].mxu0 %v380
      %v448 = vpop.f32.mrb[0].mxu0
      %v449 = vadd.f32 %v371, %v448
      %v450 = vpop.f32.mrb[0].mxu0
      %v451 = vadd.f32 %v375, %v450
      %452 = vdwg.mxu0
      %v453 = vmax.f32 %v449, 0.0
      %v454 = vmax.f32 %v451, 0.0
      %v455 = vld [vmem:[%s5] sm:$0xff]
      %v456 = vld [vmem:[%s5 + $0x8] sm:$0xff]
      %v457 = vld [vmem:[%s5 + $0x10] sm:$0xff]
      %v458 = vld [vmem:[%s5 + $0x18] sm:$0xff]
      %v459 = vld [vmem:[%s5 + $0x20] sm:$0xff]
      %v460 = vld [vmem:[%s5 + $0x28] sm:$0xff]
      %v461 = vld [vmem:[%s5 + $0x30] sm:$0xff]
      %v462 = vld [vmem:[%s5 + $0x38] sm:$0xff]
      %v463 = vld [vmem:[%s5 + $0x40] sm:$0xff]
      %v464 = vld [vmem:[%s5 + $0x48] sm:$0xff]
      %v465 = vld [vmem:[%s5 + $0x50] sm:$0xff]
      %v466 = vld [vmem:[%s5 + $0x58] sm:$0xff]
      %v467 = vld [vmem:[%s5 + $0x60] sm:$0xff]
      %v468 = vld [vmem:[%s5 + $0x68] sm:$0xff]
      %v469 = vld [vmem:[%s5 + $0x70] sm:$0xff]
      %v470 = vld [vmem:[%s5 + $0x78] sm:$0xff]
      %v471 = vld [vmem:[%s5 + $0x80] sm:$0xff]
      %v472 = vld [vmem:[%s5 + $0x88] sm:$0xff]
      %v473 = vld [vmem:[%s5 + $0x90] sm:$0xff]
      %v474 = vld [vmem:[%s5 + $0x98] sm:$0xff]
      %v475 = vld [vmem:[%s5 + $0xa0] sm:$0xff]
      %v476 = vld [vmem:[%s5 + $0xa8] sm:$0xff]
      %v477 = vld [vmem:[%s5 + $0xb0] sm:$0xff]
      %v478 = vld [vmem:[%s5 + $0xb8] sm:$0xff]
      %v479 = vld [vmem:[%s5 + $0xc0] sm:$0xff]
      %v480 = vld [vmem:[%s5 + $0xc8] sm:$0xff]
      %v481 = vld [vmem:[%s5 + $0xd0] sm:$0xff]
      %v482 = vld [vmem:[%s5 + $0xd8] sm:$0xff]
      %v483 = vld [vmem:[%s5 + $0xe0] sm:$0xff]
      %v484 = vld [vmem:[%s5 + $0xe8] sm:$0xff]
      %v485 = vld [vmem:[%s5 + $0xf0] sm:$0xff]
      %v486 = vld [vmem:[%s5 + $0xf8] sm:$0xff]
      %v487 = vld [vmem:[%s6] sm:$0x1]
      %v489 = vlaneseq
      %v490 = vshrl.u32 %v489, 7
      %v491 = vsub.s32 0, %v490
      %v492 = vrot.slane %v487, %v491
      %494 = vmatprep.subr.mxu0 0.0
      %495 = vmatpush1.msra.mxu0 %v455
      %496 = vmatprep.subr.mxu0 0.0
      %497 = vmatpush1.msra.mxu0 %v456
      %498 = vmatprep.subr.mxu0 0.0
      %499 = vmatpush1.msra.mxu0 %v457
      %500 = vmatprep.subr.mxu0 0.0
      %501 = vmatpush1.msra.mxu0 %v458
      %502 = vmatprep.subr.mxu0 0.0
      %503 = vmatpush1.msra.mxu0 %v459
      %504 = vmatprep.subr.mxu0 0.0
      %505 = vmatpush1.msra.mxu0 %v460
      %506 = vmatprep.subr.mxu0 0.0
      %507 = vmatpush1.msra.mxu0 %v461
      %508 = vmatprep.subr.mxu0 0.0
      %509 = vmatpush1.msra.mxu0 %v462
      %510 = vmatprep.subr.mxu0 0.0
      %511 = vmatpush1.msra.mxu0 %v463
      %512 = vmatprep.subr.mxu0 0.0
      %513 = vmatpush1.msra.mxu0 %v464
      %514 = vmatprep.subr.mxu0 0.0
      %515 = vmatpush1.msra.mxu0 %v465
      %516 = vmatprep.subr.mxu0 0.0
      %517 = vmatpush1.msra.mxu0 %v466
      %518 = vmatprep.subr.mxu0 0.0
      %519 = vmatpush1.msra.mxu0 %v467
      %520 = vmatprep.subr.mxu0 0.0
      %521 = vmatpush1.msra.mxu0 %v468
      %522 = vmatprep.subr.mxu0 0.0
      %523 = vmatpush1.msra.mxu0 %v469
      %524 = vmatprep.subr.mxu0 0.0
      %525 = vmatpush1.msra.mxu0 %v470
      %526 = vmatprep.subr.mxu0 0.0
      %527 = vmatpush1.msra.mxu0 %v471
      %528 = vmatprep.subr.mxu0 0.0
      %529 = vmatpush1.msra.mxu0 %v472
      %530 = vmatprep.subr.mxu0 0.0
      %531 = vmatpush1.msra.mxu0 %v473
      %532 = vmatprep.subr.mxu0 0.0
      %533 = vmatpush1.msra.mxu0 %v474
      %534 = vmatprep.subr.mxu0 0.0
      %535 = vmatpush1.msra.mxu0 %v475
      %536 = vmatprep.subr.mxu0 0.0
      %537 = vmatpush1.msra.mxu0 %v476
      %538 = vmatprep.subr.mxu0 0.0
      %539 = vmatpush1.msra.mxu0 %v477
      %540 = vmatprep.subr.mxu0 0.0
      %541 = vmatpush1.msra.mxu0 %v478
      %542 = vmatprep.subr.mxu0 0.0
      %543 = vmatpush1.msra.mxu0 %v479
      %544 = vmatprep.subr.mxu0 0.0
      %545 = vmatpush1.msra.mxu0 %v480
      %546 = vmatprep.subr.mxu0 0.0
      %547 = vmatpush1.msra.mxu0 %v481
      %548 = vmatprep.subr.mxu0 0.0
      %549 = vmatpush1.msra.mxu0 %v482
      %550 = vmatprep.subr.mxu0 0.0
      %551 = vmatpush1.msra.mxu0 %v483
      %552 = vmatprep.subr.mxu0 0.0
      %553 = vmatpush1.msra.mxu0 %v484
      %554 = vmatprep.subr.mxu0 0.0
      %555 = vmatpush1.msra.mxu0 %v485
      %556 = vmatprep.subr.mxu0 0.0
      %557 = vmatpush1.msra.mxu0 %v486
      %558 = vmatprep.mubr.f32.mxu0 %v454
      %559 = vmatmul.mubr.f32.gmra.mrb[0].mxu0 %v453
      %v560 = vpop.f32.mrb[0].mxu0
      %v561 = vadd.f32 %v492, %v560
      %v562 = vpop.f32.mrb[0].mxu0
      %563 = vdwg.mxu0
      %v564 = vmax.f32 %v561, 0.0
      %v565 = vsub.f32 0.0, %v564
      %v566 = vmul.f32 %v565, 1.442695
      %v567 = vpow.pop %v566
      %v568 = vadd.f32 %v567, 1.0
      %v569 = vrcp.pop %v568
      %v570 = vmul.f32 1.0, %v569
      %vm571 = vcmask 64512
      %572 = vst.msk [vmem:[%s273] sm:$0xff] %vm571, %v570
      %p573 = scmp.lt.s32.totalorder %s18, 2
      %s574 = scalar_select %p573, %s18, 2
      %s575 = smul.addr %s574, 8
      %s576 = scalar_lea.vmem %s7, %s575
      // Predicated region
      $region49: #{tpu_custom_call.1} parent=47 // pred_check
        %p577 = pneg %p188
      $region50: #{tpu_custom_call.1} parent=47 // pred_check_branch
        %579 = sbr.rel (%p577) target = $region52
      $region51: #{tpu_custom_call.1} parent=47 // pred_region
        _
      $region52: #{tpu_custom_call.1} parent=47 // pred_fallthru
        _
    $region48: #{tpu_custom_call.1} parent=5 // pred_fallthru
      _
    %p580 = scmp.le.s32.totalorder 2, %s13
    // Predicated region
    $region53: #{tpu_custom_call.1} parent=5 // pred_check
      %p581 = pneg %p580
    $region54: #{tpu_custom_call.1} parent=5 // pred_check_branch
      %583 = sbr.rel (%p581) target = $region56
    $region55: #{tpu_custom_call.1} parent=5 // pred_region
      %s584 = ssub.s32 %s13, 2
      // Predicated region
      $region57: #{tpu_custom_call.1} parent=55 // pred_check
        %p585 = pneg %p194
      $region58: #{tpu_custom_call.1} parent=55 // pred_check_branch
        %587 = sbr.rel (%p585) target = $region60
      $region59: #{tpu_custom_call.1} parent=55 // pred_region
        %p588 = scmp.lt.s32.totalorder %s19, 2
        %s589 = scalar_select %p588, %s19, 2
        %s590 = smul.addr %s589, 8
        %s591 = scalar_lea.vmem %s7, %s590
      $region60: #{tpu_custom_call.1} parent=55 // pred_fallthru
        _
    $region56: #{tpu_custom_call.1} parent=5 // pred_fallthru
      _
  $region6: #{tpu_custom_call.1} parent=0 // loop_footer
    %s17 = sadd.s32 1, %s13
  $region7: #{tpu_custom_call.1} parent=0 // loop_footer_branch
    %12 = sbr.rel target = $region3
  $region8: #{tpu_custom_call.1} parent=0 // loop_exit
    _

</llo_original>
